<compile_context>
chip_gen: v7x
topology: tpu7x:2x2x1
jax: 0.10.0
libtpu: 0.0.40
codegen_flags: <defaults>
</compile_context>

<pallas_src>
import functools

import jax
import jax.numpy as jnp
from jax.experimental import pallas as pl
from jax.experimental.pallas import tpu as pltpu
from jax.scipy.special import erf

# Problem sizes (tabular folktables-style MLP)
IN_SHAPE = 16
H1 = 64
H2 = 32
OUT_SHAPE = 4

# Rows per grid step we aim for on large batches (review: 2048-8192, ~4-8 steps).
TARGET_TILE_B = 4096


def _round_up(a, m):
    return ((a + m - 1) // m) * m


def _pick_tile_b(batch):
    """Heuristic batch tile.

    - batch <= TARGET_TILE_B: a single full-extent tile (full-extent blocks are
      exempt from the (8,128) divisibility rule, and one step minimizes
      per-step overhead).
    - larger batches: an even number of grid steps (v7x dual-TensorCore load
      balance) of roughly TARGET_TILE_B rows, rounded to a multiple of 512.
    """
    if batch <= TARGET_TILE_B:
        return batch
    n_steps = 2 * pl.cdiv(batch, 2 * TARGET_TILE_B)
    return _round_up(pl.cdiv(batch, n_steps), 512)


def _gelu(x, approximate):
    if approximate:
        # tanh approximation: the transcendental lands on the EUP slot instead
        # of a long VALU erf polynomial.
        return jax.nn.gelu(x, approximate=True)
    # PyTorch nn.GELU() default: exact erf-based GELU, computed in x.dtype.
    half = jnp.asarray(0.5, x.dtype)
    one = jnp.asarray(1.0, x.dtype)
    inv_sqrt2 = jnp.asarray(0.7071067811865476, x.dtype)
    return half * x * (one + erf(x * inv_sqrt2))


def mlp_kernel(x_ref, w1_ref, b1_ref, w2_ref, b2_ref, w3_ref, b3_ref, o_ref,
               *, approximate_gelu, bf16_epilogue):
    # Epilogue dtype: f32 everywhere by default (v5e-safe). On v6e/v7x a bf16
    # epilogue halves the h1/h2 vreg footprint and the GELU VALU work.
    ep = jnp.bfloat16 if bf16_epilogue else jnp.float32

    # Cast only at the MXU inputs (no-op if x is already bf16); accumulate f32.
    x = x_ref[...].astype(jnp.bfloat16)

    h1 = jnp.dot(x, w1_ref[...], preferred_element_type=jnp.float32)
    h1 = _gelu(h1.astype(ep) + b1_ref[...].astype(ep), approximate_gelu)

    h2 = jnp.dot(h1.astype(jnp.bfloat16), w2_ref[...],
                 preferred_element_type=jnp.float32)
    h2 = _gelu(h2.astype(ep) + b2_ref[...].astype(ep), approximate_gelu)

    # Final layer emitted directly in (TILE_B, OUT) layout; the small masked
    # store is cheaper than a second HBM pass to transpose in the wrapper.
    out = jnp.dot(h2.astype(jnp.bfloat16), w3_ref[...],
                  preferred_element_type=jnp.float32)
    o_ref[...] = (out + b3_ref[...]).astype(o_ref.dtype)


def simplenet_diff_forward(x, params, *, tile_b=None, approximate_gelu=False,
                           bf16_epilogue=False):
    """x: (B, IN_SHAPE) float32 or bfloat16 -> (B, OUT_SHAPE) float32."""
    w1, b1, w2, b2, w3, b3 = params
    batch, in_dim = x.shape
    out_dim = w3.shape[1]

    if tile_b is None:
        tile_b = _pick_tile_b(batch)
    n_tiles = pl.cdiv(batch, tile_b)   # ragged last block; no jnp.pad of x

    kernel = functools.partial(mlp_kernel,
                               approximate_gelu=approximate_gelu,
                               bf16_epilogue=bf16_epilogue)

    # Weights/biases use constant index maps -> Pallas fetches them once and
    # keeps them VMEM-resident across grid steps (no per-step weight DMA).
    return pl.pallas_call(
        kernel,
        out_shape=jax.ShapeDtypeStruct((batch, out_dim), jnp.float32),
        grid_spec=pltpu.PrefetchScalarGridSpec(
            num_scalar_prefetch=0,
            grid=(n_tiles,),
            in_specs=[
                pl.BlockSpec((tile_b, in_dim), lambda i: (i, 0)),   # x tile (per step)
                pl.BlockSpec((in_dim, H1), lambda i: (0, 0)),       # w1 (resident, bf16)
                pl.BlockSpec((1, H1), lambda i: (0, 0)),            # b1 (f32)
                pl.BlockSpec((H1, H2), lambda i: (0, 0)),           # w2 (resident, bf16)
                pl.BlockSpec((1, H2), lambda i: (0, 0)),            # b2 (f32)
                pl.BlockSpec((H2, out_dim), lambda i: (0, 0)),      # w3 (resident, bf16)
                pl.BlockSpec((1, out_dim), lambda i: (0, 0)),       # b3 (f32)
            ],
            out_specs=pl.BlockSpec((tile_b, out_dim), lambda i: (i, 0)),
        ),
        compiler_params=pltpu.CompilerParams(
            dimension_semantics=("parallel",),
        ),
    )(x, w1, b1, w2, b2, w3, b3)


def init_params(key):
    """Deterministic synthetic parameters (shapes from SimpleNet_diff.__init__)."""
    ks = jax.random.split(key, 6)

    def linear(kw, kb, fan_in, fan_out):
        bound = 1.0 / jnp.sqrt(jnp.float32(fan_in))
        w = jax.random.uniform(kw, (fan_in, fan_out), jnp.float32, -bound, bound)
        b = jax.random.uniform(kb, (1, fan_out), jnp.float32, -bound, bound)
        return w, b

    w1, b1 = linear(ks[0], ks[1], IN_SHAPE, H1)
    w2, b2 = linear(ks[2], ks[3], H1, H2)
    w3, b3 = linear(ks[4], ks[5], H2, OUT_SHAPE)

    # Weights stored bf16 for native MXU throughput; biases stay f32.
    # (Keep f32 weights instead if bit-closeness to the PyTorch module matters.)
    return (
        w1.astype(jnp.bfloat16), b1,
        w2.astype(jnp.bfloat16), b2,
        w3.astype(jnp.bfloat16), b3,   # w3: (H2, OUT), b3: (1, OUT)
    )


def reference_forward(x, params, approximate_gelu=False):
    """Precision-matched reference (bf16 matmul inputs, f32 accumulate/epilogue)."""
    w1, b1, w2, b2, w3, b3 = params
    f32 = jnp.float32
    bf = lambda a: a.astype(jnp.bfloat16).astype(f32)
    g = lambda v: _gelu(v, approximate_gelu)
    h1 = g(bf(x) @ w1.astype(f32) + b1)
    h2 = g(bf(h1) @ w2.astype(f32) + b2)
    return bf(h2) @ w3.astype(f32) + b3


def reference_forward_f32(x, params):
    """Full-f32 exact-erf reference (module semantics check, looser tolerance)."""
    w1, b1, w2, b2, w3, b3 = params
    f32 = jnp.float32
    h1 = _gelu(x.astype(f32) @ w1.astype(f32) + b1, False)
    h2 = _gelu(h1 @ w2.astype(f32) + b2, False)
    return h2 @ w3.astype(f32) + b3


if __name__ == "__main__":
    key = jax.random.PRNGKey(0)
    kx1, kx2, kx3, kp = jax.random.split(key, 4)
    params = init_params(kp)

    fwd = jax.jit(simplenet_diff_forward,
                  static_argnames=("tile_b", "approximate_gelu", "bf16_epilogue"))

    # Small batch (consistent with the module; single full-extent tile).
    x_small = jax.random.normal(kx1, (8, IN_SHAPE), dtype=jnp.float32)
    out_small = jax.block_until_ready(fwd(x_small, params))
    assert out_small.shape == (8, OUT_SHAPE)
    assert jnp.allclose(out_small, reference_forward(x_small, params),
                        atol=1e-2, rtol=1e-2), "mismatch vs matched-precision reference"
    assert jnp.allclose(out_small, reference_forward_f32(x_small, params),
                        atol=5e-2, rtol=5e-2), "mismatch vs f32 exact reference"

    # Medium batch, auto tile (single tile), no padding anywhere.
    x_big = jax.random.normal(kx2, (1050, IN_SHAPE), dtype=jnp.float32)
    out_big = jax.block_until_ready(fwd(x_big, params))
    assert out_big.shape == (1050, OUT_SHAPE)
    assert jnp.allclose(out_big, reference_forward(x_big, params),
                        atol=1e-2, rtol=1e-2), "mismatch (medium batch, single tile)"

    # Same batch forced multi-step with a ragged final block (1050 = 2*512 + 26).
    out_ragged = jax.block_until_ready(fwd(x_big, params, tile_b=512))
    assert jnp.allclose(out_ragged, reference_forward(x_big, params),
                        atol=1e-2, rtol=1e-2), "mismatch (ragged multi-step path)"

    # Large batch -> auto heuristic picks an even number of ~2.5K-row steps.
    x_large = jax.random.normal(kx3, (9000, IN_SHAPE), dtype=jnp.float32)
    out_large = jax.block_until_ready(fwd(x_large, params))
    assert out_large.shape == (9000, OUT_SHAPE)
    assert jnp.allclose(out_large, reference_forward(x_large, params),
                        atol=1e-2, rtol=1e-2), "mismatch (large auto-tiled batch)"

    # Optional tanh-approx GELU path (EUP slot) against a matching reference.
    out_tanh = jax.block_until_ready(fwd(x_big, params, approximate_gelu=True))
    assert jnp.allclose(out_tanh, reference_forward(x_big, params, approximate_gelu=True),
                        atol=1e-2, rtol=1e-2), "mismatch vs tanh-gelu reference"

    # bf16 input accepted end-to-end (kernel truncates to bf16 anyway; no wrapper cast).
    out_xbf = jax.block_until_ready(fwd(x_big.astype(jnp.bfloat16), params))
    assert jnp.allclose(out_xbf, reference_forward(x_big, params),
                        atol=1e-2, rtol=1e-2), "mismatch (bf16 input path)"

    # TODO(synk): enable bf16_epilogue=True on v6e/v7x (bf16 VPU/EUP) once a
    # bundle dump confirms the GELU VALU/EUP work, not the MXU, is the binding slot.

    print("KERNEL_OK")
</pallas_src>

<mosaic_0001>
module attributes {stable_mosaic.version = 11 : i64} {
  func.func @mlp_kernel(%arg0: i32, %arg1: memref<8x16xf32, #tpu.memory_space<vmem>>, %arg2: memref<16x64xbf16, #tpu.memory_space<vmem>>, %arg3: memref<1x64xf32, #tpu.memory_space<vmem>>, %arg4: memref<64x32xbf16, #tpu.memory_space<vmem>>, %arg5: memref<1x32xf32, #tpu.memory_space<vmem>>, %arg6: memref<32x4xbf16, #tpu.memory_space<vmem>>, %arg7: memref<1x4xf32, #tpu.memory_space<vmem>>, %arg8: memref<8x4xf32, #tpu.memory_space<vmem>>) attributes {dimension_semantics = [#tpu.dimension_semantics<parallel>], iteration_bounds = array<i64: 1>, scalar_prefetch = 0 : i64, scratch_operands = 0 : i64, tpu.core_type = #tpu.core_type<tc>, window_params = [{transform_indices = @transform_0, window_bounds = array<i64: 8, 16>}, {pipeline_mode = #tpu.pipeline_mode<synchronous>, transform_indices = @transform_1, window_bounds = array<i64: 16, 64>}, {pipeline_mode = #tpu.pipeline_mode<synchronous>, transform_indices = @transform_2, window_bounds = array<i64: 1, 64>}, {pipeline_mode = #tpu.pipeline_mode<synchronous>, transform_indices = @transform_3, window_bounds = array<i64: 64, 32>}, {pipeline_mode = #tpu.pipeline_mode<synchronous>, transform_indices = @transform_4, window_bounds = array<i64: 1, 32>}, {pipeline_mode = #tpu.pipeline_mode<synchronous>, transform_indices = @transform_5, window_bounds = array<i64: 32, 4>}, {pipeline_mode = #tpu.pipeline_mode<synchronous>, transform_indices = @transform_6, window_bounds = array<i64: 1, 4>}, {transform_indices = @transform_7, window_bounds = array<i64: 8, 4>}]} {
    %c0 = arith.constant 0 : index
    %c0_0 = arith.constant 0 : index
    %0 = vector.load %arg1[%c0, %c0_0] : memref<8x16xf32, #tpu.memory_space<vmem>>, vector<8x16xf32>
    %1 = arith.truncf %0 : vector<8x16xf32> to vector<8x16xbf16>
    %c0_1 = arith.constant 0 : index
    %c0_2 = arith.constant 0 : index
    %2 = vector.load %arg2[%c0_1, %c0_2] : memref<16x64xbf16, #tpu.memory_space<vmem>>, vector<16x64xbf16>
    %cst = arith.constant dense<0.000000e+00> : vector<8x64xf32>
    %3 = tpu.matmul %1, %2, %cst {dimension_numbers = #tpu.dot_dimension_numbers<[1], [0], [0], [1], [0, 0, 1, 1], [], []>} : vector<8x16xbf16>, vector<16x64xbf16>, vector<8x64xf32> -> vector<8x64xf32>
    %c0_3 = arith.constant 0 : index
    %c0_4 = arith.constant 0 : index
    %4 = vector.load %arg3[%c0_3, %c0_4] : memref<1x64xf32, #tpu.memory_space<vmem>>, vector<1x64xf32>
    %5 = vector.broadcast %4 : vector<1x64xf32> to vector<8x64xf32>
    %6 = arith.addf %3, %5 : vector<8x64xf32>
    %cst_5 = arith.constant 5.000000e-01 : f32
    %7 = vector.broadcast %cst_5 : f32 to vector<8x64xf32>
    %8 = arith.mulf %7, %6 : vector<8x64xf32>
    %cst_6 = arith.constant 0.707106769 : f32
    %9 = vector.broadcast %cst_6 : f32 to vector<8x64xf32>
    %10 = arith.mulf %6, %9 : vector<8x64xf32>
    %11 = math.erf %10 : vector<8x64xf32>
    %cst_7 = arith.constant 1.000000e+00 : f32
    %12 = vector.broadcast %cst_7 : f32 to vector<8x64xf32>
    %13 = arith.addf %12, %11 : vector<8x64xf32>
    %14 = arith.mulf %8, %13 : vector<8x64xf32>
    %15 = arith.truncf %14 : vector<8x64xf32> to vector<8x64xbf16>
    %c0_8 = arith.constant 0 : index
    %c0_9 = arith.constant 0 : index
    %16 = vector.load %arg4[%c0_8, %c0_9] : memref<64x32xbf16, #tpu.memory_space<vmem>>, vector<64x32xbf16>
    %cst_10 = arith.constant dense<0.000000e+00> : vector<8x32xf32>
    %17 = tpu.matmul %15, %16, %cst_10 {dimension_numbers = #tpu.dot_dimension_numbers<[1], [0], [0], [1], [0, 0, 1, 1], [], []>} : vector<8x64xbf16>, vector<64x32xbf16>, vector<8x32xf32> -> vector<8x32xf32>
    %c0_11 = arith.constant 0 : index
    %c0_12 = arith.constant 0 : index
    %18 = vector.load %arg5[%c0_11, %c0_12] : memref<1x32xf32, #tpu.memory_space<vmem>>, vector<1x32xf32>
    %19 = vector.broadcast %18 : vector<1x32xf32> to vector<8x32xf32>
    %20 = arith.addf %17, %19 : vector<8x32xf32>
    %cst_13 = arith.constant 5.000000e-01 : f32
    %21 = vector.broadcast %cst_13 : f32 to vector<8x32xf32>
    %22 = arith.mulf %21, %20 : vector<8x32xf32>
    %cst_14 = arith.constant 0.707106769 : f32
    %23 = vector.broadcast %cst_14 : f32 to vector<8x32xf32>
    %24 = arith.mulf %20, %23 : vector<8x32xf32>
    %25 = math.erf %24 : vector<8x32xf32>
    %cst_15 = arith.constant 1.000000e+00 : f32
    %26 = vector.broadcast %cst_15 : f32 to vector<8x32xf32>
    %27 = arith.addf %26, %25 : vector<8x32xf32>
    %28 = arith.mulf %22, %27 : vector<8x32xf32>
    %29 = arith.truncf %28 : vector<8x32xf32> to vector<8x32xbf16>
    %c0_16 = arith.constant 0 : index
    %c0_17 = arith.constant 0 : index
    %30 = vector.load %arg6[%c0_16, %c0_17] : memref<32x4xbf16, #tpu.memory_space<vmem>>, vector<32x4xbf16>
    %cst_18 = arith.constant dense<0.000000e+00> : vector<8x4xf32>
    %31 = tpu.matmul %29, %30, %cst_18 {dimension_numbers = #tpu.dot_dimension_numbers<[1], [0], [0], [1], [0, 0, 1, 1], [], []>} : vector<8x32xbf16>, vector<32x4xbf16>, vector<8x4xf32> -> vector<8x4xf32>
    %c0_19 = arith.constant 0 : index
    %c0_20 = arith.constant 0 : index
    %32 = vector.load %arg7[%c0_19, %c0_20] : memref<1x4xf32, #tpu.memory_space<vmem>>, vector<1x4xf32>
    %33 = vector.broadcast %32 : vector<1x4xf32> to vector<8x4xf32>
    %34 = arith.addf %31, %33 : vector<8x4xf32>
    %c0_21 = arith.constant 0 : index
    %c0_22 = arith.constant 0 : index
    %35 = vector.load %arg8[%c0_21, %c0_22] : memref<8x4xf32, #tpu.memory_space<vmem>>, vector<8x4xf32>
    tpu.vector_store %arg8[%c0_21, %c0_22], %34 {strides = array<i32>} : memref<8x4xf32, #tpu.memory_space<vmem>>, vector<8x4xf32>,
    return
  }
  func.func @transform_0(%arg0: i32) -> (i32, i32) {
    %c0_i32 = arith.constant 0 : i32
    %c0_i32_0 = arith.constant 0 : i32
    return %arg0, %c0_i32 : i32, i32
  }
  func.func @transform_1(%arg0: i32) -> (i32, i32) {
    %c0_i32 = arith.constant 0 : i32
    %c0_i32_0 = arith.constant 0 : i32
    %c0_i32_1 = arith.constant 0 : i32
    return %c0_i32, %c0_i32_0 : i32, i32
  }
  func.func @transform_2(%arg0: i32) -> (i32, i32) {
    %c0_i32 = arith.constant 0 : i32
    %c0_i32_0 = arith.constant 0 : i32
    %c0_i32_1 = arith.constant 0 : i32
    return %c0_i32, %c0_i32_0 : i32, i32
  }
  func.func @transform_3(%arg0: i32) -> (i32, i32) {
    %c0_i32 = arith.constant 0 : i32
    %c0_i32_0 = arith.constant 0 : i32
    %c0_i32_1 = arith.constant 0 : i32
    return %c0_i32, %c0_i32_0 : i32, i32
  }
  func.func @transform_4(%arg0: i32) -> (i32, i32) {
    %c0_i32 = arith.constant 0 : i32
    %c0_i32_0 = arith.constant 0 : i32
    %c0_i32_1 = arith.constant 0 : i32
    return %c0_i32, %c0_i32_0 : i32, i32
  }
  func.func @transform_5(%arg0: i32) -> (i32, i32) {
    %c0_i32 = arith.constant 0 : i32
    %c0_i32_0 = arith.constant 0 : i32
    %c0_i32_1 = arith.constant 0 : i32
    return %c0_i32, %c0_i32_0 : i32, i32
  }
  func.func @transform_6(%arg0: i32) -> (i32, i32) {
    %c0_i32 = arith.constant 0 : i32
    %c0_i32_0 = arith.constant 0 : i32
    %c0_i32_1 = arith.constant 0 : i32
    return %c0_i32, %c0_i32_0 : i32, i32
  }
  func.func @transform_7(%arg0: i32) -> (i32, i32) {
    %c0_i32 = arith.constant 0 : i32
    %c0_i32_0 = arith.constant 0 : i32
    return %arg0, %c0_i32 : i32, i32
  }
}

</mosaic_0001>

<llo_original>
// kernel: simplenet_diff_forward.1
$region0: #{simplenet_diff_forward.1}
  #allocation0 [shape = 'u32[]', space=smem, size = 0x4, offset = 0x4, fixed_abs, tag = 'smem constant byte address 0x4 - core index']
  #allocation1 [shape = 'u32[144,128]{1,0:T(1,128)}', space=vmem, size = 0x12000, scoped, tag = 'internal scratch']
  %s0 = inlined_call_operand.vmem [shape: f32[8,16], index: 0, kind: input, shape index: {}]
  %s1 = inlined_call_operand.vmem [shape: bf16[16,64], index: 1, kind: input, shape index: {}]
  %s2 = inlined_call_operand.vmem [shape: f32[1,64], index: 2, kind: input, shape index: {}]
  %s3 = inlined_call_operand.vmem [shape: bf16[64,32], index: 3, kind: input, shape index: {}]
  %s4 = inlined_call_operand.vmem [shape: f32[1,32], index: 4, kind: input, shape index: {}]
  %s5 = inlined_call_operand.vmem [shape: bf16[32,4], index: 5, kind: input, shape index: {}]
  %s6 = inlined_call_operand.vmem [shape: f32[1,4], index: 6, kind: input, shape index: {}]
  %s7 = inlined_call_operand.vmem [shape: f32[8,4], index: 7, kind: output, shape index: {}]
  %s8 = sld [smem:[#allocation0]]
  $region38: #{simplenet_diff_forward.1} parent=0
    _
  %s10 = ssub.s32 1, %s8
  %s11 = scalar_select 0, %s10, %s8
  // Predicated region
  $region2: #{simplenet_diff_forward.1} parent=0 // pred_check
    _
  $region3: #{simplenet_diff_forward.1} parent=0 // pred_check_branch
    %13 = sbr.rel (0) target = $region5
  $region4: #{simplenet_diff_forward.1} parent=0 // pred_region
    _
  $region5: #{simplenet_diff_forward.1} parent=0 // pred_fallthru
    _
  // Predicated region
  $region6: #{simplenet_diff_forward.1} parent=0 // pred_check
    _
  $region7: #{simplenet_diff_forward.1} parent=0 // pred_check_branch
    %15 = sbr.rel (0) target = $region9
  $region8: #{simplenet_diff_forward.1} parent=0 // pred_region
    _
  $region9: #{simplenet_diff_forward.1} parent=0 // pred_fallthru
    _
  // Predicated region
  $region10: #{simplenet_diff_forward.1} parent=0 // pred_check
    _
  $region11: #{simplenet_diff_forward.1} parent=0 // pred_check_branch
    %17 = sbr.rel (0) target = $region13
  $region12: #{simplenet_diff_forward.1} parent=0 // pred_region
    _
  $region13: #{simplenet_diff_forward.1} parent=0 // pred_fallthru
    _
  // Predicated region
  $region14: #{simplenet_diff_forward.1} parent=0 // pred_check
    _
  $region15: #{simplenet_diff_forward.1} parent=0 // pred_check_branch
    %19 = sbr.rel (0) target = $region17
  $region16: #{simplenet_diff_forward.1} parent=0 // pred_region
    _
  $region17: #{simplenet_diff_forward.1} parent=0 // pred_fallthru
    _
  // Predicated region
  $region18: #{simplenet_diff_forward.1} parent=0 // pred_check
    _
  $region19: #{simplenet_diff_forward.1} parent=0 // pred_check_branch
    %21 = sbr.rel (0) target = $region21
  $region20: #{simplenet_diff_forward.1} parent=0 // pred_region
    _
  $region21: #{simplenet_diff_forward.1} parent=0 // pred_fallthru
    _
  // Predicated region
  $region22: #{simplenet_diff_forward.1} parent=0 // pred_check
    _
  $region23: #{simplenet_diff_forward.1} parent=0 // pred_check_branch
    %23 = sbr.rel (0) target = $region25
  $region24: #{simplenet_diff_forward.1} parent=0 // pred_region
    _
  $region25: #{simplenet_diff_forward.1} parent=0 // pred_fallthru
    _
  // Predicated region
  $region26: #{simplenet_diff_forward.1} parent=0 // pred_check
    _
  $region27: #{simplenet_diff_forward.1} parent=0 // pred_check_branch
    %25 = sbr.rel (0) target = $region29
  $region28: #{simplenet_diff_forward.1} parent=0 // pred_region
    _
  $region29: #{simplenet_diff_forward.1} parent=0 // pred_fallthru
    _
  %v27 = vld [vmem:[%s0] sm:$0xff]
  %v28 = vpack.c.bf16 %v27, %v27
  %v29 = vld [vmem:[%s1] sm:$0xf]
  %v30 = vld [vmem:[%s1 + $0x4] sm:$0xf]
  %v31 = vld [vmem:[%s2] sm:$0x1]
  %v33 = vlaneseq
  %v34 = vshrl.u32 %v33, 7
  %v35 = vsub.s32 0, %v34
  %v36 = vrot.slane %v31, %v35
  %v40 = vunpack.c.l.b16 %v29
  %v41 = vunpack.c.l.b16 %v30
  %v42 = vpack.c.b16 %v41, %v40
  %vm44 = vcmask 130048
  %v46 = vsel %vm44, %v28, 0
  %48 = vmatprep.subr.bf16.mxu0 0
  %49 = vmatpush1.bf16.msra.mxu0 %v42
  %50 = vmatprep.subr.bf16.mxu0 0
  %51 = vmatpush1.bf16.msra.mxu0 0
  %52 = vmatprep.subr.bf16.mxu0 0
  %53 = vmatpush1.bf16.msra.mxu0 0
  %54 = vmatprep.subr.bf16.mxu0 0
  %55 = vmatpush1.bf16.msra.mxu0 0
  %56 = vmatprep.subr.bf16.mxu0 0
  %57 = vmatpush1.bf16.msra.mxu0 0
  %58 = vmatprep.subr.bf16.mxu0 0
  %59 = vmatpush1.bf16.msra.mxu0 0
  %60 = vmatprep.subr.bf16.mxu0 0
  %61 = vmatpush1.bf16.msra.mxu0 0
  %62 = vmatprep.subr.bf16.mxu0 0
  %63 = vmatpush1.bf16.msra.mxu0 0
  %64 = vmatprep.subr.bf16.mxu0 0
  %65 = vmatpush1.bf16.msra.mxu0 0
  %66 = vmatprep.subr.bf16.mxu0 0
  %67 = vmatpush1.bf16.msra.mxu0 0
  %68 = vmatprep.subr.bf16.mxu0 0
  %69 = vmatpush1.bf16.msra.mxu0 0
  %70 = vmatprep.subr.bf16.mxu0 0
  %71 = vmatpush1.bf16.msra.mxu0 0
  %72 = vmatprep.subr.bf16.mxu0 0
  %73 = vmatpush1.bf16.msra.mxu0 0
  %74 = vmatprep.subr.bf16.mxu0 0
  %75 = vmatpush1.bf16.msra.mxu0 0
  %76 = vmatprep.subr.bf16.mxu0 0
  %77 = vmatpush1.bf16.msra.mxu0 0
  %78 = vmatprep.subr.bf16.mxu0 0
  %79 = vmatpush1.bf16.msra.mxu0 0
  %80 = vmatprep.mubr.bf16.mxu0 0
  %81 = vmatmul.mubr.bf16.gmra.mrb[0].mxu0 %v46
  %v82 = vpop.f32.mrb[0].mxu0
  %v83 = vadd.f32 %v36, %v82
  %v84 = vpop.f32.mrb[0].mxu0
  %v85 = vpop.f32.mrb[0].mxu0
  %v86 = vpop.f32.mrb[0].mxu0
  %87 = vdwg.mxu0
  %v88 = vmul.f32 %v83, 0.5
  %v89 = vmul.f32 %v83, 0.70710677
  %v90 = verf.f32.pop %v89
  %v91 = vadd.f32 %v90, 1.0
  %v92 = vmul.f32 %v88, %v91
  %v93 = vpack.c.bf16 %v92, %v92
  %v94 = vld [vmem:[%s3] sm:$0xf]
  %v95 = vld [vmem:[%s3 + $0x4] sm:$0xf]
  %v96 = vld [vmem:[%s3 + $0x8] sm:$0xf]
  %v97 = vld [vmem:[%s3 + $0xc] sm:$0xf]
  %v98 = vld [vmem:[%s3 + $0x10] sm:$0xf]
  %v99 = vld [vmem:[%s3 + $0x14] sm:$0xf]
  %v100 = vld [vmem:[%s3 + $0x18] sm:$0xf]
  %v101 = vld [vmem:[%s3 + $0x1c] sm:$0xf]
  %v102 = vld [vmem:[%s4] sm:$0x1]
  %v104 = vlaneseq
  %v105 = vshrl.u32 %v104, 7
  %v106 = vsub.s32 0, %v105
  %v107 = vrot.slane %v102, %v106
  %v117 = vunpack.c.l.b16 %v94
  %v118 = vunpack.c.l.b16 %v95
  %v119 = vunpack.c.l.b16 %v96
  %v120 = vunpack.c.l.b16 %v97
  %v121 = vunpack.c.l.b16 %v98
  %v122 = vunpack.c.l.b16 %v99
  %v123 = vunpack.c.l.b16 %v100
  %v124 = vunpack.c.l.b16 %v101
  %v125 = vpack.c.b16 %v118, %v117
  %v126 = vpack.c.b16 %v120, %v119
  %v127 = vpack.c.b16 %v122, %v121
  %v128 = vpack.c.b16 %v124, %v123
  %vm133 = vcmask 523264
  %v135 = vsel %vm133, %v93, 0
  %137 = vmatprep.subr.bf16.mxu0 0
  %138 = vmatpush1.bf16.msra.mxu0 %v125
  %139 = vmatprep.subr.bf16.mxu0 0
  %140 = vmatpush1.bf16.msra.mxu0 %v126
  %141 = vmatprep.subr.bf16.mxu0 0
  %142 = vmatpush1.bf16.msra.mxu0 %v127
  %143 = vmatprep.subr.bf16.mxu0 0
  %144 = vmatpush1.bf16.msra.mxu0 %v128
  %145 = vmatprep.subr.bf16.mxu0 0
  %146 = vmatpush1.bf16.msra.mxu0 0
  %147 = vmatprep.subr.bf16.mxu0 0
  %148 = vmatpush1.bf16.msra.mxu0 0
  %149 = vmatprep.subr.bf16.mxu0 0
  %150 = vmatpush1.bf16.msra.mxu0 0
  %151 = vmatprep.subr.bf16.mxu0 0
  %152 = vmatpush1.bf16.msra.mxu0 0
  %153 = vmatprep.subr.bf16.mxu0 0
  %154 = vmatpush1.bf16.msra.mxu0 0
  %155 = vmatprep.subr.bf16.mxu0 0
  %156 = vmatpush1.bf16.msra.mxu0 0
  %157 = vmatprep.subr.bf16.mxu0 0
  %158 = vmatpush1.bf16.msra.mxu0 0
  %159 = vmatprep.subr.bf16.mxu0 0
  %160 = vmatpush1.bf16.msra.mxu0 0
  %161 = vmatprep.subr.bf16.mxu0 0
  %162 = vmatpush1.bf16.msra.mxu0 0
  %163 = vmatprep.subr.bf16.mxu0 0
  %164 = vmatpush1.bf16.msra.mxu0 0
  %165 = vmatprep.subr.bf16.mxu0 0
  %166 = vmatpush1.bf16.msra.mxu0 0
  %167 = vmatprep.subr.bf16.mxu0 0
  %168 = vmatpush1.bf16.msra.mxu0 0
  %169 = vmatprep.mubr.bf16.mxu0 0
  %170 = vmatmul.mubr.bf16.gmra.mrb[0].mxu0 %v135
  %v171 = vpop.f32.mrb[0].mxu0
  %v172 = vadd.f32 %v107, %v171
  %v173 = vpop.f32.mrb[0].mxu0
  %v174 = vpop.f32.mrb[0].mxu0
  %v175 = vpop.f32.mrb[0].mxu0
  %176 = vdwg.mxu0
  %v177 = vmul.f32 %v172, 0.5
  %v178 = vmul.f32 %v172, 0.70710677
  %v179 = verf.f32.pop %v178
  %v180 = vadd.f32 %v179, 1.0
  %v181 = vmul.f32 %v177, %v180
  %v182 = vpack.c.bf16 %v181, %v181
  %v183 = vld [vmem:[%s5] sm:$0xf]
  %v184 = vld [vmem:[%s5 + $0x4] sm:$0xf]
  %v185 = vld [vmem:[%s5 + $0x8] sm:$0xf]
  %v186 = vld [vmem:[%s5 + $0xc] sm:$0xf]
  %v187 = vld [vmem:[%s6] sm:$0x1]
  %v189 = vlaneseq
  %v190 = vshrl.u32 %v189, 7
  %v191 = vsub.s32 0, %v190
  %v192 = vrot.slane %v187, %v191
  %v198 = vunpack.c.l.b16 %v183
  %v199 = vunpack.c.l.b16 %v184
  %v200 = vunpack.c.l.b16 %v185
  %v201 = vunpack.c.l.b16 %v186
  %v202 = vpack.c.b16 %v199, %v198
  %v203 = vpack.c.b16 %v201, %v200
  %vm206 = vcmask 261120
  %v208 = vsel %vm206, %v182, 0
  %210 = vmatprep.subr.bf16.mxu0 0
  %211 = vmatpush1.bf16.msra.mxu0 %v202
  %212 = vmatprep.subr.bf16.mxu0 0
  %213 = vmatpush1.bf16.msra.mxu0 %v203
  %214 = vmatprep.subr.bf16.mxu0 0
  %215 = vmatpush1.bf16.msra.mxu0 0
  %216 = vmatprep.subr.bf16.mxu0 0
  %217 = vmatpush1.bf16.msra.mxu0 0
  %218 = vmatprep.subr.bf16.mxu0 0
  %219 = vmatpush1.bf16.msra.mxu0 0
  %220 = vmatprep.subr.bf16.mxu0 0
  %221 = vmatpush1.bf16.msra.mxu0 0
  %222 = vmatprep.subr.bf16.mxu0 0
  %223 = vmatpush1.bf16.msra.mxu0 0
  %224 = vmatprep.subr.bf16.mxu0 0
  %225 = vmatpush1.bf16.msra.mxu0 0
  %226 = vmatprep.subr.bf16.mxu0 0
  %227 = vmatpush1.bf16.msra.mxu0 0
  %228 = vmatprep.subr.bf16.mxu0 0
  %229 = vmatpush1.bf16.msra.mxu0 0
  %230 = vmatprep.subr.bf16.mxu0 0
  %231 = vmatpush1.bf16.msra.mxu0 0
  %232 = vmatprep.subr.bf16.mxu0 0
  %233 = vmatpush1.bf16.msra.mxu0 0
  %234 = vmatprep.subr.bf16.mxu0 0
  %235 = vmatpush1.bf16.msra.mxu0 0
  %236 = vmatprep.subr.bf16.mxu0 0
  %237 = vmatpush1.bf16.msra.mxu0 0
  %238 = vmatprep.subr.bf16.mxu0 0
  %239 = vmatpush1.bf16.msra.mxu0 0
  %240 = vmatprep.subr.bf16.mxu0 0
  %241 = vmatpush1.bf16.msra.mxu0 0
  %242 = vmatprep.mubr.bf16.mxu0 0
  %243 = vmatmul.mubr.bf16.gmra.mrb[0].mxu0 %v208
  %v244 = vpop.f32.mrb[0].mxu0
  %v245 = vadd.f32 %v192, %v244
  %v246 = vpop.f32.mrb[0].mxu0
  %v247 = vpop.f32.mrb[0].mxu0
  %v248 = vpop.f32.mrb[0].mxu0
  %249 = vdwg.mxu0
  %vm250 = vcmask 31744
  %251 = vst.msk [vmem:[%s7] sm:$0xff] %vm250, %v245
  // Predicated region
  $region30: #{simplenet_diff_forward.1} parent=0 // pred_check
    _
  $region31: #{simplenet_diff_forward.1} parent=0 // pred_check_branch
    %253 = sbr.rel (0) target = $region33
  $region32: #{simplenet_diff_forward.1} parent=0 // pred_region
    _
  $region33: #{simplenet_diff_forward.1} parent=0 // pred_fallthru
    _
  // Predicated region
  $region34: #{simplenet_diff_forward.1} parent=0 // pred_check
    _
  $region35: #{simplenet_diff_forward.1} parent=0 // pred_check_branch
    %255 = sbr.rel (0) target = $region37
  $region36: #{simplenet_diff_forward.1} parent=0 // pred_region
    _
  $region37: #{simplenet_diff_forward.1} parent=0 // pred_fallthru
    _

</llo_original>
